<compile_context>
chip_gen: v5e
topology: v5e:2x2
jax: 0.10.0
libtpu: 0.0.40
codegen_flags: <defaults>
</compile_context>

<pallas_src>
import functools
import math

import jax
import jax.numpy as jnp
from jax import lax
from jax.experimental import pallas as pl
from jax.experimental.pallas import tpu as pltpu


def _gate_kernel(patch_ref, w1_ref, dw_ref, o_ref, *, BN, P, inv_pool):
    """One block of BN examples per grid step.

    patch_ref: (BN*P, KC1) bf16  stride-2 im2col patches (+ constant-1 bias col)
    w1_ref   : (KC1, C1)  bf16   3x3 conv weights (+ bias passthrough column)
    dw_ref   : (C1, 1)    f32    logit-difference projection (last row = db)
    o_ref    : (1, BN, 1) f32    hard gate per example
    """
    C1 = w1_ref.shape[1]

    # fused stride-2 conv + ReLU: one MXU matmul over all positions of the
    # block; bias feature -> act[:, C] == relu(1) == 1 for real rows.
    act = jnp.maximum(
        jnp.dot(patch_ref[...], w1_ref[...],
                preferred_element_type=jnp.float32),
        0.0)                                                   # (BN*P, C1) f32

    # global average pool: layout-preserving split of the sublane axis
    # (P is a multiple of 8 here) + sublane reduce on the XLU.
    pooled = jnp.sum(act.reshape(BN, P, C1), axis=1) * inv_pool     # (BN, C1)

    # project onto the logit-difference direction; the bias difference rides on
    # the constant-1 feature (pooled[:, C] == 1, dw[C] == db).
    score = jnp.dot(pooled, dw_ref[...],
                    preferred_element_type=jnp.float32)             # (BN, 1)

    # hard gate: softmax(l)[1] > 0.5  <=>  l1 - l0 > 0  <=>  score > 0
    gate = jnp.where(score > 0.0, 1.0, 0.0).astype(o_ref.dtype)     # (BN, 1)
    o_ref[...] = gate.reshape(1, BN, 1)        # layout-preserving store


def pack_gate_params(w1_hwio, w2, b2, *, dtype=jnp.bfloat16):
    """Pack module weights once (hoisted out of the per-call path).

    Returns:
      w1_aug: (9C+1, C+1) conv weights with a bias-passthrough row/column.
      dw_aug: (C+1, 1) f32 logit-difference vector, last entry = bias diff.
    """
    C = w1_hwio.shape[-1]
    KC = 9 * C
    w1_mat = w1_hwio.reshape(KC, C).astype(jnp.float32)
    top = jnp.concatenate([w1_mat, jnp.zeros((KC, 1), jnp.float32)], axis=1)
    bot = jnp.concatenate(
        [jnp.zeros((1, C), jnp.float32), jnp.ones((1, 1), jnp.float32)], axis=1)
    w1_aug = jnp.concatenate([top, bot], axis=0).astype(dtype)      # (KC+1, C+1)

    dw = (w2[:, 1] - w2[:, 0]).astype(jnp.float32)                  # (C,)
    db = (b2[1] - b2[0]).astype(jnp.float32)                        # ()
    dw_aug = jnp.concatenate([dw, db[None]])[:, None]               # (C+1, 1)
    return w1_aug, dw_aug


@jax.jit
def feedforward_gate_ii(x_nchw, w1_aug, dw_aug):
    """x_nchw: (N, C, H, W) float32 (PyTorch layout). Returns (N, 1, 1, 1)."""
    N, C, H, W = x_nchw.shape
    OH, OW = (H + 1) // 2, (W + 1) // 2
    P = OH * OW
    KC = 9 * C
    KC1 = KC + 1
    C1 = C + 1
    cdtype = w1_aug.dtype                         # bf16 compute / f32 accumulate

    # ---- plain-JAX glue: layout, padding, stride-2 im2col ------------------
    x = jnp.transpose(x_nchw, (0, 2, 3, 1)).astype(cdtype)          # NHWC
    xp = jnp.pad(x, ((0, 0), (1, 1), (1, 1), (0, 0)))               # conv pad=1
    taps = []
    for kh in range(3):
        for kw in range(3):
            taps.append(lax.slice(
                xp, (0, kh, kw, 0),
                (N, kh + 2 * OH - 1, kw + 2 * OW - 1, C),
                (1, 2, 2, 1)))                                      # (N, OH, OW, C)
    patches = jnp.concatenate(taps, axis=-1).reshape(N, P, KC)      # (N, P, 9C)

    # constant-1 feature carries the 1x1-conv bias through relu(1)==1.
    patches = jnp.concatenate(
        [patches, jnp.ones((N, P, 1), cdtype)], axis=-1)            # (N, P, 9C+1)

    # ---- batch blocking: minimal padding, BN need not be a multiple of 128 --
    MAX_BN = 128
    n_blocks = -(-N // MAX_BN)
    BN = -(-N // n_blocks)                      # examples per grid block
    N_pad = n_blocks * BN
    if N_pad != N:
        # zero rows -> zero bias feature -> score 0 -> gate 0, sliced off below.
        patches = jnp.pad(patches, ((0, N_pad - N), (0, 0), (0, 0)))
    patches2d = patches.reshape(N_pad * P, KC1)

    kernel = functools.partial(_gate_kernel, BN=BN, P=P, inv_pool=1.0 / P)

    out3d = pl.pallas_call(
        kernel,
        out_shape=jax.ShapeDtypeStruct((n_blocks, BN, 1), jnp.float32),
        grid_spec=pltpu.PrefetchScalarGridSpec(
            num_scalar_prefetch=0,
            grid=(n_blocks,),
            in_specs=[
                pl.BlockSpec((BN * P, KC1), lambda n: (n, 0)),
                pl.BlockSpec((KC1, C1), lambda n: (0, 0)),   # resident weights
                pl.BlockSpec((C1, 1), lambda n: (0, 0)),     # resident weights
            ],
            out_specs=pl.BlockSpec((1, BN, 1), lambda n: (n, 0, 0)),
        ),
        compiler_params=pltpu.CompilerParams(
            dimension_semantics=("parallel",),
            # bf16 patch block (<=1.5 MiB) x2 buffers + ~4 MiB act spill fits
            # comfortably; explicit limit keeps v5e (16 MiB default scoped) and
            # v7x (64 MiB physical) behavior predictable if shapes grow.
            vmem_limit_bytes=32 * 1024 * 1024),
    )(patches2d, w1_aug, dw_aug)

    return out3d.reshape(N_pad)[:N].reshape(N, 1, 1, 1)


def _reference(x_nchw, w1_hwio, w2, b2):
    """Pure-JAX f32 reference replicating the PyTorch forward."""
    y = lax.conv_general_dilated(
        x_nchw, w1_hwio, window_strides=(2, 2), padding=((1, 1), (1, 1)),
        dimension_numbers=("NCHW", "HWIO", "NCHW"))
    y = jnp.maximum(y, 0.0)
    pooled = jnp.mean(y, axis=(2, 3))                               # (N, C)
    logits = pooled @ w2 + b2                                       # (N, 2)
    p = jax.nn.softmax(logits, axis=-1)
    gate = (p[:, 1] > 0.5).astype(jnp.float32).reshape(-1, 1, 1, 1)
    score = (logits[:, 1] - logits[:, 0]).reshape(-1, 1, 1, 1)
    return gate, score


if __name__ == "__main__":
    # module defaults: pool_size=5 (unused in forward), channel=10
    N, C, H, W = 2, 10, 16, 16

    key = jax.random.PRNGKey(0)
    kx, kw1, kw2, kb2 = jax.random.split(key, 4)

    # shapes from __init__:
    #   conv1: Conv2d(C, C, 3, stride=2, pad=1, bias=False) -> HWIO (3,3,C,C)
    #   linear_layer: Conv2d(C, 2, 1) -> weight (C, 2) + bias (2,)
    x = jax.random.normal(kx, (N, C, H, W), jnp.float32)
    w1 = jax.random.normal(kw1, (3, 3, C, C), jnp.float32) * (1.0 / math.sqrt(9 * C))
    w2 = jax.random.normal(kw2, (C, 2), jnp.float32) * (1.0 / math.sqrt(C))
    b2 = jax.random.normal(kb2, (2,), jnp.float32) * 0.1

    w1_aug, dw_aug = pack_gate_params(w1, w2, b2, dtype=jnp.bfloat16)
    out = jax.block_until_ready(feedforward_gate_ii(x, w1_aug, dw_aug))

    ref_gate, ref_score = _reference(x, w1, w2, b2)
    assert out.shape == (N, 1, 1, 1), out.shape
    # bf16 patches can only flip the hard gate when the f32 logit difference is
    # at a knife edge (|score| ~ 0); require exact agreement everywhere else.
    agree = (out == ref_gate) | (jnp.abs(ref_score) < 1e-2)
    assert bool(jnp.all(agree)), (out, ref_gate, ref_score)
    print("KERNEL_OK")
</pallas_src>

<mosaic_0001>
module attributes {stable_mosaic.version = 11 : i64} {
  func.func @_gate_kernel(%arg0: i32, %arg1: memref<128x91xbf16, #tpu.memory_space<vmem>>, %arg2: memref<91x11xbf16, #tpu.memory_space<vmem>>, %arg3: memref<11x1xf32, #tpu.memory_space<vmem>>, %arg4: memref<1x2x1xf32, #tpu.memory_space<vmem>>) attributes {dimension_semantics = [#tpu.dimension_semantics<parallel>], iteration_bounds = array<i64: 1>, scalar_prefetch = 0 : i64, scratch_operands = 0 : i64, tpu.core_type = #tpu.core_type<tc>, window_params = [{transform_indices = @transform_0, window_bounds = array<i64: 128, 91>}, {pipeline_mode = #tpu.pipeline_mode<synchronous>, transform_indices = @transform_1, window_bounds = array<i64: 91, 11>}, {pipeline_mode = #tpu.pipeline_mode<synchronous>, transform_indices = @transform_2, window_bounds = array<i64: 11, 1>}, {transform_indices = @transform_3, window_bounds = array<i64: 1, 2, 1>}]} {
    %c0 = arith.constant 0 : index
    %c0_0 = arith.constant 0 : index
    %0 = vector.load %arg1[%c0, %c0_0] : memref<128x91xbf16, #tpu.memory_space<vmem>>, vector<128x91xbf16>
    %c0_1 = arith.constant 0 : index
    %c0_2 = arith.constant 0 : index
    %1 = vector.load %arg2[%c0_1, %c0_2] : memref<91x11xbf16, #tpu.memory_space<vmem>>, vector<91x11xbf16>
    %cst = arith.constant dense<0.000000e+00> : vector<128x11xf32>
    %2 = tpu.matmul %0, %1, %cst {dimension_numbers = #tpu.dot_dimension_numbers<[1], [0], [0], [1], [0, 0, 1, 1], [], []>} : vector<128x91xbf16>, vector<91x11xbf16>, vector<128x11xf32> -> vector<128x11xf32>
    %cst_3 = arith.constant 0.000000e+00 : f32
    %3 = vector.broadcast %cst_3 : f32 to vector<128x11xf32>
    %4 = arith.maximumf %2, %3 : vector<128x11xf32>
    %5 = vector.shape_cast %4 : vector<128x11xf32> to vector<2x64x11xf32>
    %cst_4 = arith.constant dense<0.000000e+00> : vector<2x11xf32>
    %6 = vector.multi_reduction <add>, %5, %cst_4 [1] : vector<2x64x11xf32> to vector<2x11xf32>
    %cst_5 = arith.constant 1.562500e-02 : f32
    %7 = vector.broadcast %cst_5 : f32 to vector<2x11xf32>
    %8 = arith.mulf %6, %7 : vector<2x11xf32>
    %c0_6 = arith.constant 0 : index
    %c0_7 = arith.constant 0 : index
    %9 = vector.load %arg3[%c0_6, %c0_7] : memref<11x1xf32, #tpu.memory_space<vmem>>, vector<11x1xf32>
    %cst_8 = arith.constant dense<0.000000e+00> : vector<2x1xf32>
    %10 = tpu.matmul %8, %9, %cst_8 {dimension_numbers = #tpu.dot_dimension_numbers<[1], [0], [0], [1], [0, 0, 1, 1], [], []>} : vector<2x11xf32>, vector<11x1xf32>, vector<2x1xf32> -> vector<2x1xf32>
    %cst_9 = arith.constant 0.000000e+00 : f32
    %11 = vector.broadcast %cst_9 : f32 to vector<2x1xf32>
    %12 = arith.cmpf ogt, %10, %11 : vector<2x1xf32>
    %cst_10 = arith.constant 1.000000e+00 : f32
    %cst_11 = arith.constant 0.000000e+00 : f32
    %13 = vector.broadcast %cst_10 : f32 to vector<2x1xf32>
    %14 = vector.broadcast %cst_11 : f32 to vector<2x1xf32>
    %15 = arith.select %12, %13, %14 : vector<2x1xi1>, vector<2x1xf32>
    %16 = vector.shape_cast %15 : vector<2x1xf32> to vector<1x2x1xf32>
    %c0_12 = arith.constant 0 : index
    %c0_13 = arith.constant 0 : index
    %c0_14 = arith.constant 0 : index
    %17 = vector.load %arg4[%c0_12, %c0_13, %c0_14] : memref<1x2x1xf32, #tpu.memory_space<vmem>>, vector<1x2x1xf32>
    tpu.vector_store %arg4[%c0_12, %c0_13, %c0_14], %16 {strides = array<i32>} : memref<1x2x1xf32, #tpu.memory_space<vmem>>, vector<1x2x1xf32>,
    return
  }
  func.func @transform_0(%arg0: i32) -> (i32, i32) {
    %c0_i32 = arith.constant 0 : i32
    %c0_i32_0 = arith.constant 0 : i32
    return %arg0, %c0_i32 : i32, i32
  }
  func.func @transform_1(%arg0: i32) -> (i32, i32) {
    %c0_i32 = arith.constant 0 : i32
    %c0_i32_0 = arith.constant 0 : i32
    %c0_i32_1 = arith.constant 0 : i32
    return %c0_i32, %c0_i32_0 : i32, i32
  }
  func.func @transform_2(%arg0: i32) -> (i32, i32) {
    %c0_i32 = arith.constant 0 : i32
    %c0_i32_0 = arith.constant 0 : i32
    %c0_i32_1 = arith.constant 0 : i32
    return %c0_i32, %c0_i32_0 : i32, i32
  }
  func.func @transform_3(%arg0: i32) -> (i32, i32, i32) {
    %c0_i32 = arith.constant 0 : i32
    %c0_i32_0 = arith.constant 0 : i32
    %c0_i32_1 = arith.constant 0 : i32
    return %arg0, %c0_i32, %c0_i32_0 : i32, i32, i32
  }
}

</mosaic_0001>

<llo_original>
// kernel: feedforward_gate_ii.1
$region0: #{feedforward_gate_ii.1}
  #allocation0 [shape = 'u32[]', space=smem, size = 0x4, offset = 0x4, fixed_abs, tag = 'smem constant byte address 0x4 - core index']
  #allocation1 [shape = 'u32[72,128]{1,0:T(1,128)}', space=vmem, size = 0x9000, scoped, tag = 'internal scratch']
  %s0 = inlined_call_operand.vmem [shape: bf16[128,91], index: 0, kind: input, shape index: {}]
  %s1 = inlined_call_operand.vmem [shape: bf16[91,11], index: 1, kind: input, shape index: {}]
  %s2 = inlined_call_operand.vmem [shape: f32[11,1], index: 2, kind: input, shape index: {}]
  %s3 = inlined_call_operand.vmem [shape: f32[1,2,1], index: 3, kind: output, shape index: {}]
  %s4 = sld [smem:[#allocation0]]
  $region22: #{feedforward_gate_ii.1} parent=0
    _
  %s6 = ssub.s32 1, %s4
  %s7 = scalar_select 0, %s6, %s4
  // Predicated region
  $region2: #{feedforward_gate_ii.1} parent=0 // pred_check
    _
  $region3: #{feedforward_gate_ii.1} parent=0 // pred_check_branch
    %9 = sbr.rel (0) target = $region5
  $region4: #{feedforward_gate_ii.1} parent=0 // pred_region
    _
  $region5: #{feedforward_gate_ii.1} parent=0 // pred_fallthru
    _
  // Predicated region
  $region6: #{feedforward_gate_ii.1} parent=0 // pred_check
    _
  $region7: #{feedforward_gate_ii.1} parent=0 // pred_check_branch
    %11 = sbr.rel (0) target = $region9
  $region8: #{feedforward_gate_ii.1} parent=0 // pred_region
    _
  $region9: #{feedforward_gate_ii.1} parent=0 // pred_fallthru
    _
  // Predicated region
  $region10: #{feedforward_gate_ii.1} parent=0 // pred_check
    _
  $region11: #{feedforward_gate_ii.1} parent=0 // pred_check_branch
    %13 = sbr.rel (0) target = $region13
  $region12: #{feedforward_gate_ii.1} parent=0 // pred_region
    _
  $region13: #{feedforward_gate_ii.1} parent=0 // pred_fallthru
    _
  %v15 = vld [vmem:[%s0] sm:$0xf]
  %v16 = vld [vmem:[%s0 + $0x4] sm:$0xf]
  %v17 = vld [vmem:[%s0 + $0x8] sm:$0xf]
  %v18 = vld [vmem:[%s0 + $0xc] sm:$0xf]
  %v19 = vld [vmem:[%s0 + $0x10] sm:$0xf]
  %v20 = vld [vmem:[%s0 + $0x14] sm:$0xf]
  %v21 = vld [vmem:[%s0 + $0x18] sm:$0xf]
  %v22 = vld [vmem:[%s0 + $0x1c] sm:$0xf]
  %v23 = vld [vmem:[%s0 + $0x20] sm:$0xf]
  %v24 = vld [vmem:[%s0 + $0x24] sm:$0xf]
  %v25 = vld [vmem:[%s0 + $0x28] sm:$0xf]
  %v26 = vld [vmem:[%s0 + $0x2c] sm:$0xf]
  %v27 = vld [vmem:[%s0 + $0x30] sm:$0xf]
  %v28 = vld [vmem:[%s0 + $0x34] sm:$0xf]
  %v29 = vld [vmem:[%s0 + $0x38] sm:$0xf]
  %v30 = vld [vmem:[%s0 + $0x3c] sm:$0xf]
  %v31 = vld [vmem:[%s1] sm:$0xf]
  %v32 = vld [vmem:[%s1 + $0x4] sm:$0xf]
  %v33 = vld [vmem:[%s1 + $0x8] sm:$0xf]
  %v34 = vld [vmem:[%s1 + $0xc] sm:$0xf]
  %v35 = vld [vmem:[%s1 + $0x10] sm:$0xf]
  %v36 = vld [vmem:[%s1 + $0x14] sm:$0xf]
  %v37 = vld [vmem:[%s1 + $0x18] sm:$0xf]
  %v38 = vld [vmem:[%s1 + $0x1c] sm:$0xf]
  %v39 = vld [vmem:[%s1 + $0x20] sm:$0xf]
  %v40 = vld [vmem:[%s1 + $0x24] sm:$0xf]
  %v41 = vld [vmem:[%s1 + $0x28] sm:$0xf]
  %v42 = vld [vmem:[%s1 + $0x2c] sm:$0x3]
  %v59 = vunpack.c.l.b16 %v15
  %v60 = vunpack.c.l.b16 %v16
  %v61 = vunpack.c.l.b16 %v17
  %v62 = vunpack.c.l.b16 %v18
  %v63 = vunpack.c.l.b16 %v19
  %v64 = vunpack.c.l.b16 %v20
  %v65 = vunpack.c.l.b16 %v21
  %v66 = vunpack.c.l.b16 %v22
  %v67 = vunpack.c.l.b16 %v23
  %v68 = vunpack.c.l.b16 %v24
  %v69 = vunpack.c.l.b16 %v25
  %v70 = vunpack.c.l.b16 %v26
  %v71 = vunpack.c.l.b16 %v27
  %v72 = vunpack.c.l.b16 %v28
  %v73 = vunpack.c.l.b16 %v29
  %v74 = vunpack.c.l.b16 %v30
  %v75 = vpack.c.b16 %v60, %v59
  %v76 = vpack.c.b16 %v62, %v61
  %v77 = vpack.c.b16 %v64, %v63
  %v78 = vpack.c.b16 %v66, %v65
  %v79 = vpack.c.b16 %v68, %v67
  %v80 = vpack.c.b16 %v70, %v69
  %v81 = vpack.c.b16 %v72, %v71
  %v82 = vpack.c.b16 %v74, %v73
  %v95 = vunpack.c.l.b16 %v31
  %v96 = vunpack.c.l.b16 %v32
  %v97 = vunpack.c.l.b16 %v33
  %v98 = vunpack.c.l.b16 %v34
  %v99 = vunpack.c.l.b16 %v35
  %v100 = vunpack.c.l.b16 %v36
  %v101 = vunpack.c.l.b16 %v37
  %v102 = vunpack.c.l.b16 %v38
  %v103 = vunpack.c.l.b16 %v39
  %v104 = vunpack.c.l.b16 %v40
  %v105 = vunpack.c.l.b16 %v41
  %v106 = vunpack.c.l.b16 %v42
  %v107 = vpack.c.b16 %v96, %v95
  %v108 = vpack.c.b16 %v98, %v97
  %v109 = vpack.c.b16 %v100, %v99
  %v110 = vpack.c.b16 %v102, %v101
  %v111 = vpack.c.b16 %v104, %v103
  %v112 = vpack.c.b16 %v106, %v105
  %vm118 = vcmask 744448
  %v120 = vsel %vm118, %v75, 0
  %v123 = vsel %vm118, %v76, 0
  %v126 = vsel %vm118, %v77, 0
  %v129 = vsel %vm118, %v78, 0
  %v132 = vsel %vm118, %v79, 0
  %v135 = vsel %vm118, %v80, 0
  %v138 = vsel %vm118, %v81, 0
  %v141 = vsel %vm118, %v82, 0
  %vm143 = vcmask 1044480
  %vm144 = vcmask 1045504
  %v145 = vsel %vm143, 4294967295, 65535
  %v146 = vsel %vm144, %v145, 0
  %v148 = vand.u32 %v112, %v146
  %150 = vmatpush.bf16.msra.mxu0 0
  %151 = vmatpush.bf16.msra.mxu0 0
  %152 = vmatpush.bf16.msra.mxu0 %v148
  %153 = vmatpush.bf16.msra.mxu0 %v111
  %154 = vmatpush.bf16.msra.mxu0 %v110
  %155 = vmatpush.bf16.msra.mxu0 %v109
  %156 = vmatpush.bf16.msra.mxu0 %v108
  %157 = vmatpush.bf16.msra.mxu0 %v107
  %158 = vmatmul.bf16.gmra.mxu0 %v120
  %v159 = vpop.f32.mrf.mxu0
  %v160 = vadd.f32 0.0, %v159
  %v161 = vpop.f32.mrf.mxu0
  %v162 = vadd.f32 0.0, %v161
  %163 = vmatmul.bf16.gmra.mxu0 %v123
  %v164 = vpop.f32.mrf.mxu0
  %v165 = vadd.f32 0.0, %v164
  %v166 = vpop.f32.mrf.mxu0
  %v167 = vadd.f32 0.0, %v166
  %168 = vmatmul.bf16.gmra.mxu0 %v126
  %v169 = vpop.f32.mrf.mxu0
  %v170 = vadd.f32 0.0, %v169
  %v171 = vpop.f32.mrf.mxu0
  %v172 = vadd.f32 0.0, %v171
  %173 = vmatmul.bf16.gmra.mxu0 %v129
  %v174 = vpop.f32.mrf.mxu0
  %v175 = vadd.f32 0.0, %v174
  %v176 = vpop.f32.mrf.mxu0
  %v177 = vadd.f32 0.0, %v176
  %178 = vmatmul.bf16.gmra.mxu0 %v132
  %v179 = vpop.f32.mrf.mxu0
  %v180 = vadd.f32 0.0, %v179
  %v181 = vpop.f32.mrf.mxu0
  %v182 = vadd.f32 0.0, %v181
  %183 = vmatmul.bf16.gmra.mxu0 %v135
  %v184 = vpop.f32.mrf.mxu0
  %v185 = vadd.f32 0.0, %v184
  %v186 = vpop.f32.mrf.mxu0
  %v187 = vadd.f32 0.0, %v186
  %188 = vmatmul.bf16.gmra.mxu0 %v138
  %v189 = vpop.f32.mrf.mxu0
  %v190 = vadd.f32 0.0, %v189
  %v191 = vpop.f32.mrf.mxu0
  %v192 = vadd.f32 0.0, %v191
  %193 = vmatmul.bf16.gmra.mxu0 %v141
  %v194 = vpop.f32.mrf.mxu0
  %v195 = vadd.f32 0.0, %v194
  %v196 = vpop.f32.mrf.mxu0
  %v197 = vadd.f32 0.0, %v196
  %198 = vdwg.mxu0
  %v199 = vmax.f32 %v160, 0.0
  %v200 = vmax.f32 %v162, 0.0
  %v201 = vmax.f32 %v165, 0.0
  %v202 = vmax.f32 %v167, 0.0
  %v203 = vmax.f32 %v170, 0.0
  %v204 = vmax.f32 %v172, 0.0
  %v205 = vmax.f32 %v175, 0.0
  %v206 = vmax.f32 %v177, 0.0
  %v207 = vmax.f32 %v180, 0.0
  %v208 = vmax.f32 %v182, 0.0
  %v209 = vmax.f32 %v185, 0.0
  %v210 = vmax.f32 %v187, 0.0
  %v211 = vmax.f32 %v190, 0.0
  %v212 = vmax.f32 %v192, 0.0
  %v213 = vmax.f32 %v195, 0.0
  %v214 = vmax.f32 %v197, 0.0
  %vm215 = vcmask 89088
  %v216 = vsel %vm215, %v199, 0.0
  %v217 = vsel %vm215, %v200, 0.0
  %v218 = vadd.f32 %v216, %v217
  %v219 = vsel %vm215, %v201, 0.0
  %v220 = vadd.f32 %v218, %v219
  %v221 = vsel %vm215, %v202, 0.0
  %v222 = vadd.f32 %v220, %v221
  %v223 = vsel %vm215, %v203, 0.0
  %v224 = vadd.f32 %v222, %v223
  %v225 = vsel %vm215, %v204, 0.0
  %v226 = vadd.f32 %v224, %v225
  %v227 = vsel %vm215, %v205, 0.0
  %v228 = vadd.f32 %v226, %v227
  %v229 = vsel %vm215, %v206, 0.0
  %v230 = vadd.f32 %v228, %v229
  %v231 = vrot.slane %v230, 4
  %v232 = vadd.f32 %v230, %v231
  %v233 = vrot.slane %v232, 2
  %v234 = vadd.f32 %v232, %v233
  %v235 = vrot.slane %v234, 1
  %v236 = vadd.f32 %v234, %v235
  %v237 = vsel %vm215, %v207, 0.0
  %v238 = vsel %vm215, %v208, 0.0
  %v239 = vadd.f32 %v237, %v238
  %v240 = vsel %vm215, %v209, 0.0
  %v241 = vadd.f32 %v239, %v240
  %v242 = vsel %vm215, %v210, 0.0
  %v243 = vadd.f32 %v241, %v242
  %v244 = vsel %vm215, %v211, 0.0
  %v245 = vadd.f32 %v243, %v244
  %v246 = vsel %vm215, %v212, 0.0
  %v247 = vadd.f32 %v245, %v246
  %v248 = vsel %vm215, %v213, 0.0
  %v249 = vadd.f32 %v247, %v248
  %v250 = vsel %vm215, %v214, 0.0
  %v251 = vadd.f32 %v249, %v250
  %v252 = vrot.slane %v251, 4
  %v253 = vadd.f32 %v251, %v252
  %v254 = vrot.slane %v253, 2
  %v255 = vadd.f32 %v253, %v254
  %v256 = vrot.slane %v255, 1
  %v257 = vadd.f32 %v255, %v256
  %v258 = vmul.f32 %v236, 0.015625
  %v259 = vmul.f32 %v257, 0.015625
  %v260 = vld [vmem:[%s2] sm:$0xff]
  %v261 = vld [vmem:[%s2 + $0x8] sm:$0x7]
  %vm264 = vcmask 1041409
  %v265 = vsel %vm264, %v259, %v258
  %v266 = vsel %vm215, %v265, 0
  %vm268 = vcmask 1042432
  %v270 = vsel %vm268, %v261, 0
  %272 = vmatpush.msra.mxu0 0.0
  %273 = vmatpush.msra.mxu0 0.0
  %274 = vmatpush.msra.mxu0 0.0
  %275 = vmatpush.msra.mxu0 0.0
  %276 = vmatpush.msra.mxu0 0.0
  %277 = vmatpush.msra.mxu0 0.0
  %278 = vmatpush.msra.mxu0 0.0
  %279 = vmatpush.msra.mxu0 0.0
  %280 = vmatpush.msra.mxu0 0.0
  %281 = vmatpush.msra.mxu0 0.0
  %282 = vmatpush.msra.mxu0 0.0
  %283 = vmatpush.msra.mxu0 0.0
  %284 = vmatpush.msra.mxu0 0.0
  %285 = vmatpush.msra.mxu0 0.0
  %286 = vmatpush.msra.mxu0 %v270
  %287 = vmatpush.msra.mxu0 %v260
  %288 = vmatmul.f32.gmra.mxu0 %v266
  %v289 = vpop.f32.mrf.mxu0
  %v290 = vadd.f32 0.0, %v289
  %291 = vdwg.mxu0
  %vm292 = vcmp.gt.f32.partialorder %v290, 0.0
  %v293 = vsel %vm292, 1.0, 0.0
  %vm294 = vcmask 1024
  %295 = vst.msk [vmem:[%s3] sm:$0x3] %vm294, %v293
  // Predicated region
  $region14: #{feedforward_gate_ii.1} parent=0 // pred_check
    _
  $region15: #{feedforward_gate_ii.1} parent=0 // pred_check_branch
    %297 = sbr.rel (0) target = $region17
  $region16: #{feedforward_gate_ii.1} parent=0 // pred_region
    _
  $region17: #{feedforward_gate_ii.1} parent=0 // pred_fallthru
    _
  // Predicated region
  $region18: #{feedforward_gate_ii.1} parent=0 // pred_check
    _
  $region19: #{feedforward_gate_ii.1} parent=0 // pred_check_branch
    %299 = sbr.rel (0) target = $region21
  $region20: #{feedforward_gate_ii.1} parent=0 // pred_region
    _
  $region21: #{feedforward_gate_ii.1} parent=0 // pred_fallthru
    _

</llo_original>
